<compile_context>
chip_gen: v5e
topology: v5e:2x2
jax: 0.10.0
libtpu: 0.0.40
codegen_flags: <defaults>
</compile_context>

<pallas_src>
import jax
import jax.numpy as jnp
from jax.experimental import pallas as pl
from jax.experimental.pallas import tpu as pltpu


# ---------------------------------------------------------------------------
# small helpers
# ---------------------------------------------------------------------------
def _round_up(v, m):
    return (v + m - 1) // m * m


def _pick_tile(total, candidates=(512, 256, 128)):
    """Largest nice lane-aligned tile that divides `total` (else the full extent)."""
    for t in candidates:
        if total >= t and total % t == 0:
            return t
    return total


def _silu(y):
    # exact sigmoid (keeps kernel/reference bit-close); exp goes to the EUP.
    return y * (1.0 / (1.0 + jnp.exp(-y)))


def fold_bn(w_conv, gamma, beta, mean, var, eps=1e-3):
    """Fold BatchNorm into a 1x1 conv.  w_conv: (Cout, Cin).
    Returns (W, b) for y = W @ x + b[:, None] in (C, H*W) layout."""
    scale = gamma / jnp.sqrt(var + eps)
    w_eff = (w_conv * scale[:, None]).astype(jnp.float32)
    b_eff = (beta - mean * scale).astype(jnp.float32)
    return w_eff, b_eff


# ---------------------------------------------------------------------------
# Kernel 1: bifpn — normalized weighted sum of n tensors (fully fused)
# ---------------------------------------------------------------------------
def _bifpn_kernel(w_ref, *refs):
    out_ref = refs[-1]
    xs = refs[:-1]
    acc = xs[0][...] * w_ref[0]
    for i in range(1, len(xs)):
        acc = acc + xs[i][...] * w_ref[i]
    out_ref[...] = acc.astype(out_ref.dtype)


def fusion_bifpn(xs, fusion_weight):
    n = len(xs)
    shape = xs[0].shape
    dtype = xs[0].dtype
    total = 1
    for s in shape:
        total *= s

    # ReLU + normalize of the n scalar weights (negligible; same math as torch).
    w = jnp.maximum(fusion_weight.astype(jnp.float32), 0.0)
    w = w / jnp.sum(w)

    lane = 128
    rows0 = pl.cdiv(total, lane)
    tr = min(512, _round_up(rows0, 8))          # tile rows (multiple of 8)
    rows = _round_up(rows0, tr)
    padded = rows * lane

    def to2d(x):
        xf = x.reshape(-1)
        if padded != total:
            xf = jnp.pad(xf, (0, padded - total))
        return xf.reshape(rows, lane)

    xs2d = [to2d(x) for x in xs]

    in_specs = [pl.BlockSpec(memory_space=pltpu.MemorySpace.SMEM)]
    in_specs += [pl.BlockSpec((tr, lane), lambda i: (i, 0)) for _ in range(n)]

    out2d = pl.pallas_call(
        _bifpn_kernel,
        out_shape=jax.ShapeDtypeStruct((rows, lane), dtype),
        grid_spec=pltpu.PrefetchScalarGridSpec(
            num_scalar_prefetch=0,
            grid=(rows // tr,),
            in_specs=in_specs,
            out_specs=pl.BlockSpec((tr, lane), lambda i: (i, 0)),
        ),
        compiler_params=pltpu.CompilerParams(dimension_semantics=("parallel",)),
    )(w, *xs2d)
    return out2d.reshape(-1)[:total].reshape(shape)


# ---------------------------------------------------------------------------
# Kernel 2: 'weight' mode — sum_i SiLU(W_i @ x_i + b_i), fused in one call
# ---------------------------------------------------------------------------
def _convsum_kernel(w_ref, b_ref, *refs):
    out_ref = refs[-1]
    xs = refs[:-1]
    acc = None
    for i, xr in enumerate(xs):
        y = jnp.dot(w_ref[i], xr[...], preferred_element_type=jnp.float32)
        y = _silu(y + b_ref[i])
        acc = y if acc is None else acc + y
    out_ref[...] = acc.astype(out_ref.dtype)


def fusion_weight_mode(xs, conv_ws, conv_bs):
    n = len(xs)
    N, C, H, W = xs[0].shape
    HW = H * W
    thw = _pick_tile(HW)
    xs3 = [x.reshape(N, C, HW) for x in xs]            # NCHW -> (N, C, HW), no transpose
    w_all = jnp.stack(conv_ws, axis=0)                  # (n, C, C)
    b_all = jnp.stack(conv_bs, axis=0)[..., None]       # (n, C, 1)

    in_specs = [
        pl.BlockSpec((n, C, C), lambda b, j: (0, 0, 0)),
        pl.BlockSpec((n, C, 1), lambda b, j: (0, 0, 0)),
    ] + [pl.BlockSpec((None, C, thw), lambda b, j: (b, 0, j)) for _ in range(n)]

    out = pl.pallas_call(
        _convsum_kernel,
        out_shape=jax.ShapeDtypeStruct((N, C, HW), xs[0].dtype),
        grid_spec=pltpu.PrefetchScalarGridSpec(
            num_scalar_prefetch=0,
            grid=(N, HW // thw),
            in_specs=in_specs,
            out_specs=pl.BlockSpec((None, C, thw), lambda b, j: (b, 0, j)),
        ),
        compiler_params=pltpu.CompilerParams(
            dimension_semantics=("parallel", "parallel")),
    )(w_all, b_all, *xs3)
    return out.reshape(N, C, H, W)


# ---------------------------------------------------------------------------
# Kernel 3: 'adaptive' mode — convs + concat-as-accumulated-dots + softmax +
#           weighted sum, all in one kernel
# ---------------------------------------------------------------------------
def _adaptive_kernel(w_ref, b_ref, wa_ref, ba_ref, *refs):
    out_ref = refs[-1]
    xs = refs[:-1]
    n = len(xs)

    # per-input 1x1 Conv + BN + SiLU
    ys = []
    for i, xr in enumerate(xs):
        y = jnp.dot(w_ref[i], xr[...], preferred_element_type=jnp.float32)
        ys.append(_silu(y + b_ref[i]))

    # adaptive conv on the (implicit) channel concat: Wa @ cat = sum_i Wa_i @ y_i
    logits = None
    for i in range(n):
        t = jnp.dot(wa_ref[i], ys[i], preferred_element_type=jnp.float32)
        logits = t if logits is None else logits + t
    logits = _silu(logits + ba_ref[...])                 # (n, thw)

    # softmax over the n "channels" (axis 0), per spatial location
    m = jnp.max(logits, axis=0, keepdims=True)
    e = jnp.exp(logits - m)
    fusion_w = e / jnp.sum(e, axis=0, keepdims=True)     # (n, thw)

    acc = None
    for i in range(n):
        t = fusion_w[i:i + 1, :] * ys[i]
        acc = t if acc is None else acc + t
    out_ref[...] = acc.astype(out_ref.dtype)


def fusion_adaptive(xs, conv_ws, conv_bs, wa, ba):
    n = len(xs)
    N, C, H, W = xs[0].shape
    HW = H * W
    thw = _pick_tile(HW)
    xs3 = [x.reshape(N, C, HW) for x in xs]
    w_all = jnp.stack(conv_ws, axis=0)                   # (n, C, C)
    b_all = jnp.stack(conv_bs, axis=0)[..., None]        # (n, C, 1)
    # split Wa (n, n*C) into per-input slabs Wa_s[i] = Wa[:, i*C:(i+1)*C]
    wa_s = jnp.transpose(wa.reshape(n, n, C), (1, 0, 2))  # (n_slab, n, C)
    ba2 = ba.reshape(n, 1)

    in_specs = [
        pl.BlockSpec((n, C, C), lambda b, j: (0, 0, 0)),
        pl.BlockSpec((n, C, 1), lambda b, j: (0, 0, 0)),
        pl.BlockSpec((n, n, C), lambda b, j: (0, 0, 0)),
        pl.BlockSpec((n, 1), lambda b, j: (0, 0)),
    ] + [pl.BlockSpec((None, C, thw), lambda b, j: (b, 0, j)) for _ in range(n)]

    out = pl.pallas_call(
        _adaptive_kernel,
        out_shape=jax.ShapeDtypeStruct((N, C, HW), xs[0].dtype),
        grid_spec=pltpu.PrefetchScalarGridSpec(
            num_scalar_prefetch=0,
            grid=(N, HW // thw),
            in_specs=in_specs,
            out_specs=pl.BlockSpec((None, C, thw), lambda b, j: (b, 0, j)),
        ),
        compiler_params=pltpu.CompilerParams(
            dimension_semantics=("parallel", "parallel")),
    )(w_all, b_all, wa_s, ba2, *xs3)
    return out.reshape(N, C, H, W)


# ---------------------------------------------------------------------------
# Kernel 4: 'concat' mode — channel concat (pure copy)
# ---------------------------------------------------------------------------
def _concat_kernel(*refs):
    out_ref = refs[-1]
    xs = refs[:-1]
    off = 0
    for xr in xs:
        c = xr.shape[0]
        out_ref[off:off + c, :] = xr[...]
        off += c


def fusion_concat(xs):
    n = len(xs)
    N, _, H, W = xs[0].shape
    cs = [x.shape[1] for x in xs]
    c_sum = sum(cs)
    HW = H * W
    thw = _pick_tile(HW)
    xs3 = [x.reshape(N, x.shape[1], HW) for x in xs]

    in_specs = [pl.BlockSpec((None, c, thw), lambda b, j: (b, 0, j)) for c in cs]
    out = pl.pallas_call(
        _concat_kernel,
        out_shape=jax.ShapeDtypeStruct((N, c_sum, HW), xs[0].dtype),
        grid_spec=pltpu.PrefetchScalarGridSpec(
            num_scalar_prefetch=0,
            grid=(N, HW // thw),
            in_specs=in_specs,
            out_specs=pl.BlockSpec((None, c_sum, thw), lambda b, j: (b, 0, j)),
        ),
        compiler_params=pltpu.CompilerParams(
            dimension_semantics=("parallel", "parallel")),
    )(*xs3)
    return out.reshape(N, c_sum, H, W)


# ---------------------------------------------------------------------------
# Module-style dispatcher (mirrors Fusion.forward)
# ---------------------------------------------------------------------------
def fusion_forward(xs, mode, params):
    if mode == "bifpn":
        return fusion_bifpn(xs, params["fusion_weight"])
    if mode == "weight":
        return fusion_weight_mode(xs, params["conv_w"], params["conv_b"])
    if mode == "adaptive":
        return fusion_adaptive(xs, params["conv_w"], params["conv_b"],
                               params["adaptive_w"], params["adaptive_b"])
    if mode == "concat":
        return fusion_concat(xs)
    raise ValueError(mode)


# ---------------------------------------------------------------------------
# Pure-JAX references (same math) for correctness checks
# ---------------------------------------------------------------------------
def _conv1x1_ref(x, w, b):            # x (N,C,H,W), w (Cout,Cin), b (Cout,)
    y = jnp.einsum("oc,nchw->nohw", w, x) + b[None, :, None, None]
    return _silu(y)


def ref_bifpn(xs, fw):
    w = jnp.maximum(fw, 0.0)
    w = w / jnp.sum(w)
    return sum(w[i] * xs[i] for i in range(len(xs)))


def ref_weight(xs, ws, bs):
    return sum(_conv1x1_ref(xs[i], ws[i], bs[i]) for i in range(len(xs)))


def ref_adaptive(xs, ws, bs, wa, ba):
    ys = [_conv1x1_ref(xs[i], ws[i], bs[i]) for i in range(len(xs))]
    cat = jnp.concatenate(ys, axis=1)
    a = _conv1x1_ref(cat, wa, ba)
    f = jax.nn.softmax(a, axis=1)
    return sum(f[:, i:i + 1] * ys[i] for i in range(len(ys)))


def ref_concat(xs):
    return jnp.concatenate(xs, axis=1)


# ---------------------------------------------------------------------------
# main
# ---------------------------------------------------------------------------
if __name__ == "__main__":
    n_in, N, C, H, W = 3, 2, 8, 16, 16
    key = jax.random.PRNGKey(0)
    keys = jax.random.split(key, 32)

    xs = [jax.random.normal(keys[i], (N, C, H, W), jnp.float32)
          for i in range(n_in)]

    # bifpn weights (PyTorch init is ones; perturbed, strictly positive)
    fusion_weight = 0.5 + jnp.abs(jax.random.normal(keys[4], (n_in,), jnp.float32))

    # per-input Conv(inc, inc, 1) = conv1x1 + BN + SiLU (BN folded)
    conv_ws, conv_bs = [], []
    for i in range(n_in):
        kk = jax.random.split(keys[8 + i], 5)
        wc = 0.5 * jax.random.normal(kk[0], (C, C), jnp.float32)
        g = 1.0 + 0.1 * jax.random.normal(kk[1], (C,), jnp.float32)
        b = 0.1 * jax.random.normal(kk[2], (C,), jnp.float32)
        mu = 0.1 * jax.random.normal(kk[3], (C,), jnp.float32)
        var = jnp.abs(1.0 + 0.1 * jax.random.normal(kk[4], (C,), jnp.float32))
        wf, bf = fold_bn(wc, g, b, mu, var)
        conv_ws.append(wf)
        conv_bs.append(bf)

    # adaptive Conv(sum(inc), n_in, 1) (BN folded)
    kk = jax.random.split(keys[20], 5)
    wa = 0.5 * jax.random.normal(kk[0], (n_in, n_in * C), jnp.float32)
    ga = 1.0 + 0.1 * jax.random.normal(kk[1], (n_in,), jnp.float32)
    bb = 0.1 * jax.random.normal(kk[2], (n_in,), jnp.float32)
    mua = 0.1 * jax.random.normal(kk[3], (n_in,), jnp.float32)
    vara = jnp.abs(1.0 + 0.1 * jax.random.normal(kk[4], (n_in,), jnp.float32))
    waf, baf = fold_bn(wa, ga, bb, mua, vara)

    params = dict(fusion_weight=fusion_weight, conv_w=conv_ws, conv_b=conv_bs,
                  adaptive_w=waf, adaptive_b=baf)

    cases = [
        ("bifpn", fusion_forward(xs, "bifpn", params),
         ref_bifpn(xs, fusion_weight), (N, C, H, W)),
        ("weight", fusion_forward(xs, "weight", params),
         ref_weight(xs, conv_ws, conv_bs), (N, C, H, W)),
        ("adaptive", fusion_forward(xs, "adaptive", params),
         ref_adaptive(xs, conv_ws, conv_bs, waf, baf), (N, C, H, W)),
        ("concat", fusion_forward(xs, "concat", params),
         ref_concat(xs), (N, n_in * C, H, W)),
    ]

    for name, out, ref, shp in cases:
        out = jax.block_until_ready(out)
        ref = jax.block_until_ready(ref)
        assert out.shape == shp, (name, out.shape, shp)
        err = float(jnp.max(jnp.abs(out - ref)))
        assert jnp.allclose(out, ref, atol=1e-5, rtol=1e-5), (name, err)

    print("KERNEL_OK")
</pallas_src>

<mosaic_0001>
module attributes {stable_mosaic.version = 11 : i64} {
  func.func @_bifpn_kernel(%arg0: i32, %arg1: memref<3xf32, #tpu.memory_space<smem>>, %arg2: memref<32x128xf32, #tpu.memory_space<vmem>>, %arg3: memref<32x128xf32, #tpu.memory_space<vmem>>, %arg4: memref<32x128xf32, #tpu.memory_space<vmem>>, %arg5: memref<32x128xf32, #tpu.memory_space<vmem>>) attributes {dimension_semantics = [#tpu.dimension_semantics<parallel>], iteration_bounds = array<i64: 1>, scalar_prefetch = 0 : i64, scratch_operands = 0 : i64, tpu.core_type = #tpu.core_type<tc>, window_params = [{transform_indices = @transform_0, window_bounds = array<i64: 3>}, {transform_indices = @transform_1, window_bounds = array<i64: 32, 128>}, {transform_indices = @transform_2, window_bounds = array<i64: 32, 128>}, {transform_indices = @transform_3, window_bounds = array<i64: 32, 128>}, {transform_indices = @transform_4, window_bounds = array<i64: 32, 128>}]} {
    %c0 = arith.constant 0 : index
    %c0_0 = arith.constant 0 : index
    %0 = vector.load %arg2[%c0, %c0_0] : memref<32x128xf32, #tpu.memory_space<vmem>>, vector<32x128xf32>
    %c0_1 = arith.constant 0 : index
    %1 = memref.load %arg1[%c0_1] : memref<3xf32, #tpu.memory_space<smem>>
    %2 = vector.broadcast %1 : f32 to vector<32x128xf32>
    %3 = arith.mulf %0, %2 : vector<32x128xf32>
    %c0_2 = arith.constant 0 : index
    %c0_3 = arith.constant 0 : index
    %4 = vector.load %arg3[%c0_2, %c0_3] : memref<32x128xf32, #tpu.memory_space<vmem>>, vector<32x128xf32>
    %c1 = arith.constant 1 : index
    %5 = memref.load %arg1[%c1] : memref<3xf32, #tpu.memory_space<smem>>
    %6 = vector.broadcast %5 : f32 to vector<32x128xf32>
    %7 = arith.mulf %4, %6 : vector<32x128xf32>
    %8 = arith.addf %3, %7 : vector<32x128xf32>
    %c0_4 = arith.constant 0 : index
    %c0_5 = arith.constant 0 : index
    %9 = vector.load %arg4[%c0_4, %c0_5] : memref<32x128xf32, #tpu.memory_space<vmem>>, vector<32x128xf32>
    %c2 = arith.constant 2 : index
    %10 = memref.load %arg1[%c2] : memref<3xf32, #tpu.memory_space<smem>>
    %11 = vector.broadcast %10 : f32 to vector<32x128xf32>
    %12 = arith.mulf %9, %11 : vector<32x128xf32>
    %13 = arith.addf %8, %12 : vector<32x128xf32>
    %c0_6 = arith.constant 0 : index
    %c0_7 = arith.constant 0 : index
    %14 = vector.load %arg5[%c0_6, %c0_7] : memref<32x128xf32, #tpu.memory_space<vmem>>, vector<32x128xf32>
    tpu.vector_store %arg5[%c0_6, %c0_7], %13 {strides = array<i32>} : memref<32x128xf32, #tpu.memory_space<vmem>>, vector<32x128xf32>,
    return
  }
  func.func @transform_0(%arg0: i32) -> i32 {
    %c0_i32 = arith.constant 0 : i32
    %c0_i32_0 = arith.constant 0 : i32
    return %c0_i32 : i32
  }
  func.func @transform_1(%arg0: i32) -> (i32, i32) {
    %c0_i32 = arith.constant 0 : i32
    %c0_i32_0 = arith.constant 0 : i32
    return %arg0, %c0_i32 : i32, i32
  }
  func.func @transform_2(%arg0: i32) -> (i32, i32) {
    %c0_i32 = arith.constant 0 : i32
    %c0_i32_0 = arith.constant 0 : i32
    return %arg0, %c0_i32 : i32, i32
  }
  func.func @transform_3(%arg0: i32) -> (i32, i32) {
    %c0_i32 = arith.constant 0 : i32
    %c0_i32_0 = arith.constant 0 : i32
    return %arg0, %c0_i32 : i32, i32
  }
  func.func @transform_4(%arg0: i32) -> (i32, i32) {
    %c0_i32 = arith.constant 0 : i32
    %c0_i32_0 = arith.constant 0 : i32
    return %arg0, %c0_i32 : i32, i32
  }
}

</mosaic_0001>

<llo_original>
// kernel: tpu_custom_call.1
$region0: #{tpu_custom_call.1}
  #allocation0 [shape = 'u32[]', space=smem, size = 0x4, offset = 0x4, fixed_abs, tag = 'smem constant byte address 0x4 - core index']
  #allocation1 [shape = 'u32[72,128]{1,0:T(1,128)}', space=vmem, size = 0x9000, scoped, tag = 'internal scratch']
  %s0 = inlined_call_operand.hbm [shape: f32[3], index: 0, kind: input, shape index: {}]
  %s1 = inlined_call_operand.hbm [shape: f32[32,128], index: 1, kind: input, shape index: {}]
  %s2 = inlined_call_operand.hbm [shape: f32[32,128], index: 2, kind: input, shape index: {}]
  %s3 = inlined_call_operand.hbm [shape: f32[32,128], index: 3, kind: input, shape index: {}]
  %s4 = inlined_call_operand.hbm [shape: f32[32,128], index: 4, kind: output, shape index: {}]
  %s5 = sld [smem:[#allocation0]]
  $region42: #{tpu_custom_call.1} parent=0
    _
  %s7 = ssub.s32 1, %s5
  %s8 = scalar_select 0, %s7, %s5
  $region1: #{tpu_custom_call.1} parent=0
    #allocation2 [shape = 'u8[512]{0}', space=smem, size = 0x200, scoped, tag = 'input window, operand 0, single buffered']
    #allocation3 [shape = 's32[1]{0}', space=sflag, size = 0x4, scoped, tag = 'scoped memory for tpu_custom_call.1']
    #allocation4 [shape = 's32[1]{0}', space=sflag, size = 0x4, scoped, tag = 'scoped memory for tpu_custom_call.1']
    #allocation5 [shape = 's32[1]{0}', space=sflag, size = 0x4, scoped, tag = 'scoped memory for tpu_custom_call.1']
    #allocation6 [shape = 'u8[16384]{0}', space=vmem, size = 0x4000, scoped, tag = 'input window, operand 1, single buffered']
    #allocation7 [shape = 'u8[16384]{0}', space=vmem, size = 0x4000, scoped, tag = 'input window, operand 2, single buffered']
    #allocation8 [shape = 's32[1]{0}', space=sflag, size = 0x4, scoped, tag = 'scoped memory for tpu_custom_call.1']
    #allocation9 [shape = 'u8[16384]{0}', space=vmem, size = 0x4000, scoped, tag = 'input window, operand 3, single buffered']
    #allocation10 [shape = 'u8[16384]{0}', space=vmem, size = 0x4000, scoped, tag = 'output window, operand 0, single buffered']
    %9 = vsyncpa [#allocation5], 0
    %10 = vsyncpa [#allocation3], 0
    %11 = vsyncpa [#allocation8], 0
    %12 = vsyncpa [#allocation4], 0
    // Predicated region
    $region2: #{tpu_custom_call.1} parent=1 // pred_check
      _
    $region3: #{tpu_custom_call.1} parent=1 // pred_check_branch
      %14 = sbr.rel (0) target = $region5
    $region4: #{tpu_custom_call.1} parent=1 // pred_region
      %16 = vsyncadd [#allocation5], 0
      %s18 = sshll.u32 %s0, 4
      %s19 = int_to_ptr.hbm [resolvable:$true] %s18
      %21 = dma.hbm_to_smem %s19, 16, [#allocation2], [#allocation5]
    $region5: #{tpu_custom_call.1} parent=1 // pred_fallthru
      _
    // Predicated region
    $region6: #{tpu_custom_call.1} parent=1 // pred_check
      _
    $region7: #{tpu_custom_call.1} parent=1 // pred_check_branch
      %23 = sbr.rel (0) target = $region9
    $region8: #{tpu_custom_call.1} parent=1 // pred_region
      %25 = vsyncadd [#allocation3], 0
      %s26 = sshll.u32 %s1, 4
      %s27 = int_to_ptr.hbm [resolvable:$true] %s26
      %s28 = sshll.u32 [#allocation6], 4
      %s29 = int_to_ptr.vmem [resolvable:$true] %s28
      %34 = dma.hbm_to_vmem [thread:$0]  %s27, 512, %s29, [#allocation3], 128, 128, 8
    $region9: #{tpu_custom_call.1} parent=1 // pred_fallthru
      _
    // Predicated region
    $region10: #{tpu_custom_call.1} parent=1 // pred_check
      _
    $region11: #{tpu_custom_call.1} parent=1 // pred_check_branch
      %36 = sbr.rel (0) target = $region13
    $region12: #{tpu_custom_call.1} parent=1 // pred_region
      %38 = vsyncadd [#allocation8], 0
      %s39 = sshll.u32 %s2, 4
      %s40 = int_to_ptr.hbm [resolvable:$true] %s39
      %s41 = sshll.u32 [#allocation7], 4
      %s42 = int_to_ptr.vmem [resolvable:$true] %s41
      %47 = dma.hbm_to_vmem [thread:$0]  %s40, 512, %s42, [#allocation8], 128, 128, 8
    $region13: #{tpu_custom_call.1} parent=1 // pred_fallthru
      _
    // Predicated region
    $region14: #{tpu_custom_call.1} parent=1 // pred_check
      _
    $region15: #{tpu_custom_call.1} parent=1 // pred_check_branch
      %49 = sbr.rel (0) target = $region17
    $region16: #{tpu_custom_call.1} parent=1 // pred_region
      %51 = vsyncadd [#allocation8], 0
      %s52 = sshll.u32 %s3, 4
      %s53 = int_to_ptr.hbm [resolvable:$true] %s52
      %s54 = sshll.u32 [#allocation9], 4
      %s55 = int_to_ptr.vmem [resolvable:$true] %s54
      %60 = dma.hbm_to_vmem [thread:$0]  %s53, 512, %s55, [#allocation8], 128, 128, 8
    $region17: #{tpu_custom_call.1} parent=1 // pred_fallthru
      _
    // Predicated region
    $region18: #{tpu_custom_call.1} parent=1 // pred_check
      _
    $region19: #{tpu_custom_call.1} parent=1 // pred_check_branch
      %62 = sbr.rel (0) target = $region21
    $region20: #{tpu_custom_call.1} parent=1 // pred_region
      %64 = dma.done [#allocation5], 16
    $region21: #{tpu_custom_call.1} parent=1 // pred_fallthru
      _
    // Predicated region
    $region22: #{tpu_custom_call.1} parent=1 // pred_check
      _
    $region23: #{tpu_custom_call.1} parent=1 // pred_check_branch
      %66 = sbr.rel (0) target = $region25
    $region24: #{tpu_custom_call.1} parent=1 // pred_region
      %68 = dma.done [#allocation3], 512
    $region25: #{tpu_custom_call.1} parent=1 // pred_fallthru
      _
    // Predicated region
    $region26: #{tpu_custom_call.1} parent=1 // pred_check
      _
    $region27: #{tpu_custom_call.1} parent=1 // pred_check_branch
      %70 = sbr.rel (0) target = $region29
    $region28: #{tpu_custom_call.1} parent=1 // pred_region
      %72 = dma.done [#allocation8], 512
    $region29: #{tpu_custom_call.1} parent=1 // pred_fallthru
      _
    // Predicated region
    $region30: #{tpu_custom_call.1} parent=1 // pred_check
      _
    $region31: #{tpu_custom_call.1} parent=1 // pred_check_branch
      %74 = sbr.rel (0) target = $region33
    $region32: #{tpu_custom_call.1} parent=1 // pred_region
      %76 = dma.done [#allocation8], 512
    $region33: #{tpu_custom_call.1} parent=1 // pred_fallthru
      _
    %77 = sfence
    %v78 = vld [vmem:[#allocation6] sm:$0xff]
    %v79 = vld [vmem:[#allocation6 + $0x8] sm:$0xff]
    %v80 = vld [vmem:[#allocation6 + $0x10] sm:$0xff]
    %v81 = vld [vmem:[#allocation6 + $0x18] sm:$0xff]
    %s82 = sld [smem:[#allocation2]]
    %v83 = vstv %s82
    %v84 = vmul.f32 %v78, %v83
    %v85 = vmul.f32 %v79, %v83
    %v86 = vmul.f32 %v80, %v83
    %v87 = vmul.f32 %v81, %v83
    %v88 = vld [vmem:[#allocation7] sm:$0xff]
    %v89 = vld [vmem:[#allocation7 + $0x8] sm:$0xff]
    %v90 = vld [vmem:[#allocation7 + $0x10] sm:$0xff]
    %v91 = vld [vmem:[#allocation7 + $0x18] sm:$0xff]
    %s92 = sld [smem:[#allocation2 + $0x1]]
    %v93 = vstv %s92
    %v94 = vmul.f32 %v88, %v93
    %v95 = vmul.f32 %v89, %v93
    %v96 = vmul.f32 %v90, %v93
    %v97 = vmul.f32 %v91, %v93
    %v98 = vadd.f32 %v84, %v94
    %v99 = vadd.f32 %v85, %v95
    %v100 = vadd.f32 %v86, %v96
    %v101 = vadd.f32 %v87, %v97
    %v102 = vld [vmem:[#allocation9] sm:$0xff]
    %v103 = vld [vmem:[#allocation9 + $0x8] sm:$0xff]
    %v104 = vld [vmem:[#allocation9 + $0x10] sm:$0xff]
    %v105 = vld [vmem:[#allocation9 + $0x18] sm:$0xff]
    %s106 = sld [smem:[#allocation2 + $0x2]]
    %v107 = vstv %s106
    %v108 = vmul.f32 %v102, %v107
    %v109 = vmul.f32 %v103, %v107
    %v110 = vmul.f32 %v104, %v107
    %v111 = vmul.f32 %v105, %v107
    %v112 = vadd.f32 %v98, %v108
    %v113 = vadd.f32 %v99, %v109
    %v114 = vadd.f32 %v100, %v110
    %v115 = vadd.f32 %v101, %v111
    %116 = vst [vmem:[#allocation10] sm:$0xff] %v112
    %117 = vst [vmem:[#allocation10 + $0x8] sm:$0xff] %v113
    %118 = vst [vmem:[#allocation10 + $0x10] sm:$0xff] %v114
    %119 = vst [vmem:[#allocation10 + $0x18] sm:$0xff] %v115
    // Predicated region
    $region34: #{tpu_custom_call.1} parent=1 // pred_check
      _
    $region35: #{tpu_custom_call.1} parent=1 // pred_check_branch
      %121 = sbr.rel (0) target = $region37
    $region36: #{tpu_custom_call.1} parent=1 // pred_region
      %123 = vsyncadd [#allocation4], 0
      %s124 = sshll.u32 [#allocation10], 4
      %s125 = int_to_ptr.vmem [resolvable:$true] %s124
      %s126 = sshll.u32 %s4, 4
      %s127 = int_to_ptr.hbm [resolvable:$true] %s126
      %132 = dma.vmem_to_hbm [thread:$0]  %s125, 512, %s127, [#allocation4], 128, 128, 8
    $region37: #{tpu_custom_call.1} parent=1 // pred_fallthru
      _
    // Predicated region
    $region38: #{tpu_custom_call.1} parent=1 // pred_check
      _
    $region39: #{tpu_custom_call.1} parent=1 // pred_check_branch
      %134 = sbr.rel (0) target = $region41
    $region40: #{tpu_custom_call.1} parent=1 // pred_region
      %136 = dma.done [#allocation4], 512
    $region41: #{tpu_custom_call.1} parent=1 // pred_fallthru
      _
    %137 = vsyncpa [#allocation3], 1
    %138 = vsyncpa [#allocation8], 1
    %139 = vsyncpa [#allocation4], 1
    %140 = vsyncpa [#allocation5], 1

</llo_original>
